<compile_context>
chip_gen: v7x
topology: tpu7x:2x2x1
jax: 0.10.0
libtpu: 0.0.40
codegen_flags: <defaults>
</compile_context>

<pallas_src>
import jax
import jax.numpy as jnp
from jax.experimental import pallas as pl
from jax.experimental.pallas import tpu as pltpu

NEG_SLOPE = 0.01   # torch.nn.LeakyReLU default negative_slope
LANE = 128


def _round_up(n, m):
    return ((n + m - 1) // m) * m


def _leaky_relu(x):
    return jnp.where(x >= 0, x, NEG_SLOPE * x)


# --------------------------------------------------------------------------
# Kernel: 3 fused matmuls, all class structure pre-packed into the weights.
# --------------------------------------------------------------------------
def _mlp_kernel(x_ref, w1_ref, b1_ref, w2_ref, b2_ref, w3_ref, b3_ref, o_ref):
    x = x_ref[...]                                                   # (TB, Cin)
    h1 = jnp.dot(x, w1_ref[...],
                 preferred_element_type=jnp.float32) + b1_ref[...]   # (TB, P1)
    h1 = _leaky_relu(h1).astype(w2_ref.dtype)
    h2 = jnp.dot(h1, w2_ref[...],
                 preferred_element_type=jnp.float32) + b2_ref[...]   # (TB, P2)
    h2 = _leaky_relu(h2).astype(w3_ref.dtype)
    o_ref[...] = (jnp.dot(h2, w3_ref[...],
                          preferred_element_type=jnp.float32)
                  + b3_ref[...]).astype(o_ref.dtype)                 # (TB, P3)


# --------------------------------------------------------------------------
# Weight-only preprocessing.  Run once per weight update and cache the result
# (it is NOT free: exp/kron/transpose execute as real XLA ops).
# --------------------------------------------------------------------------
def pack_params(params, tau, compute_dtype=jnp.bfloat16):
    w1, b1, w2, b2, w3, b3 = params
    nc, h1_dim, cin = w1.shape           # (NC, 10, Cin)
    h2_dim = w2.shape[0]                 # 4

    # EntropyLinear concept attention: alpha/max(alpha) == exp(g - max(g)).
    gamma = jnp.sum(jnp.abs(w1), axis=1)                          # (NC, Cin)
    g = gamma / tau
    alpha_norm = jnp.exp(g - jnp.max(g, axis=1, keepdims=True))   # (NC, Cin)

    # Fold alpha into W1; pack class axis into the output-feature axis.
    w1_scaled = w1 * alpha_norm[:, None, :]                       # (NC, H1, Cin)
    w1_packed = jnp.transpose(w1_scaled, (2, 0, 1)).reshape(cin, nc * h1_dim)
    b1_packed = b1.reshape(1, nc * h1_dim)

    # Block-diagonal layers 2 and 3 (shared weights on the diagonal).
    # TODO(synk): for NC beyond a few hundred classes, replace the dense
    # kron (O(NC^2) zeros in HBM/VMEM + wasted MXU work) with a per-class
    # grid axis applying the shared (10,4)/(4,1) weights per block.
    eye = jnp.eye(nc, dtype=w2.dtype)
    w2_blk = jnp.kron(eye, w2.T)                                  # (NC*H1, NC*4)
    b2_packed = jnp.tile(b2.reshape(-1), nc).reshape(1, nc * h2_dim)
    w3_blk = jnp.kron(eye, w3.T)                                  # (NC*4, NC)
    b3_packed = jnp.broadcast_to(b3.reshape(()), (1, nc)).astype(jnp.float32)

    # Lane-dense zero padding (multiples of 128) for every packed feature axis.
    p1 = _round_up(nc * h1_dim, LANE)
    p2 = _round_up(nc * h2_dim, LANE)
    p3 = _round_up(nc, LANE)
    w1_packed = jnp.pad(w1_packed, ((0, 0), (0, p1 - nc * h1_dim)))
    b1_packed = jnp.pad(b1_packed, ((0, 0), (0, p1 - nc * h1_dim)))
    w2_blk = jnp.pad(w2_blk, ((0, p1 - nc * h1_dim), (0, p2 - nc * h2_dim)))
    b2_packed = jnp.pad(b2_packed, ((0, 0), (0, p2 - nc * h2_dim)))
    w3_blk = jnp.pad(w3_blk, ((0, p2 - nc * h2_dim), (0, p3 - nc)))
    b3_packed = jnp.pad(b3_packed, ((0, 0), (0, p3 - nc)))

    return (w1_packed.astype(compute_dtype),
            b1_packed.astype(jnp.float32),
            w2_blk.astype(compute_dtype),
            b2_packed.astype(jnp.float32),
            w3_blk.astype(compute_dtype),
            b3_packed.astype(jnp.float32))


# --------------------------------------------------------------------------
# VMEM budget / batch-tile selection.
# --------------------------------------------------------------------------
def _vmem_caps():
    try:
        cap = int(pltpu.get_tpu_info().vmem_capacity_bytes)
    except Exception:
        cap = 64 * 1024 * 1024        # conservative: v7x per-TensorCore size
    limit = min(int(cap * 0.75), 100 * 1024 * 1024)   # explicit scoped limit
    budget = int(cap * 0.5)                           # headroom for the tiler
    return budget, limit


def _choose_batch_tile(batch, per_row_bytes, weight_bytes, budget):
    b8 = max(8, _round_up(batch, 8))
    tb = 8
    for cand in (1024, 512, 256, 128, 64, 32, 16, 8):
        if cand <= b8 and weight_bytes + cand * per_row_bytes <= budget:
            tb = cand
            break
    b_pad = _round_up(b8, tb)
    # v7x megacore: guarantee >=2 grid steps once the batch fills one big
    # tile so ("parallel",) actually shards across both TCs (no-op v5e/v6e).
    if b_pad // tb == 1 and tb >= 256:
        tb //= 2
    b_pad = _round_up(max(batch, 8), tb)
    return tb, b_pad


# --------------------------------------------------------------------------
# Wrapper around pallas_call.
# --------------------------------------------------------------------------
def label_predictor_entropy_nn(x, packed, num_classes):
    w1p, b1p, w2b, b2p, w3b, b3p = packed
    B, cin = x.shape
    p1 = w1p.shape[1]
    p2 = w2b.shape[1]
    p3 = w3b.shape[1]
    compute_dtype = w1p.dtype
    itemsize = jnp.dtype(compute_dtype).itemsize

    x = x.astype(compute_dtype)

    budget, vmem_limit = _vmem_caps()
    weight_bytes = ((w1p.size + w2b.size + w3b.size) * itemsize
                    + (b1p.size + b2p.size + b3p.size) * 4)
    # x (2x buffered) + f32 out (2x buffered) + f32/bf16 intermediates.
    per_row_bytes = (2 * cin * itemsize + 2 * p3 * 4 + (p1 + p2) * (4 + itemsize))
    tb, b_pad = _choose_batch_tile(B, per_row_bytes, weight_bytes, budget)

    if b_pad != B:
        x = jnp.pad(x, ((0, b_pad - B), (0, 0)))
    grid = (b_pad // tb,)

    def _specs(single_buffer_weights):
        wkw = {"pipeline_mode": pl.Buffered(1)} if single_buffer_weights else {}
        const = lambda i: (0, 0)
        return [
            pl.BlockSpec((tb, cin), lambda i: (i, 0)),
            pl.BlockSpec((cin, p1), const, **wkw),
            pl.BlockSpec((1, p1), const, **wkw),
            pl.BlockSpec((p1, p2), const, **wkw),
            pl.BlockSpec((1, p2), const, **wkw),
            pl.BlockSpec((p2, p3), const, **wkw),
            pl.BlockSpec((1, p3), const, **wkw),
        ]

    def _run(single_buffer_weights):
        return pl.pallas_call(
            _mlp_kernel,
            out_shape=jax.ShapeDtypeStruct((b_pad, p3), jnp.float32),
            grid=grid,
            in_specs=_specs(single_buffer_weights),
            out_specs=pl.BlockSpec((tb, p3), lambda i: (i, 0)),
            compiler_params=pltpu.CompilerParams(
                dimension_semantics=("parallel",),
                vmem_limit_bytes=vmem_limit),
        )(x, w1p, b1p, w2b, b2p, w3b, b3p)

    try:
        out = _run(True)           # single-buffer the constant weight blocks
    except Exception:
        out = _run(False)          # fall back to default double-buffering

    return out[:B, :num_classes]


def label_predictor_entropy_nn_from_raw(x, params, tau,
                                        compute_dtype=jnp.bfloat16):
    """Convenience path; prefer caching pack_params() across calls."""
    packed = pack_params(params, tau, compute_dtype=compute_dtype)
    return label_predictor_entropy_nn(x, packed, params[0].shape[0])


# --------------------------------------------------------------------------
# Pure-JAX replica of the PyTorch forward (torch_explain EntropyLinear).
# --------------------------------------------------------------------------
def reference(x, params, tau):
    w1, b1, w2, b2, w3, b3 = params
    gamma = jnp.sum(jnp.abs(w1), axis=1)                     # (NC, Cin)
    alpha = jax.nn.softmax(gamma / tau, axis=1)
    alpha_norm = alpha / jnp.max(alpha, axis=1, keepdims=True)
    xw = x[None, :, :] * alpha_norm[:, None, :]              # (NC, B, Cin)
    h = jnp.einsum('nbc,nhc->nbh', xw, w1) + b1              # (NC, B, H1)
    h = jnp.transpose(h, (1, 0, 2))                          # (B, NC, H1)
    h = jnp.where(h >= 0, h, NEG_SLOPE * h)
    h = h @ w2.T + b2.reshape(-1)                            # (B, NC, 4)
    h = jnp.where(h >= 0, h, NEG_SLOPE * h)
    h = h @ w3.T + b3.reshape(-1)                            # (B, NC, 1)
    return h[..., 0]                                         # (B, NC)


if __name__ == "__main__":
    B, concept_size, num_classes = 8, 16, 4
    tau = 0.6   # lm (loss weight) does not affect the forward pass

    key = jax.random.PRNGKey(0)
    ks = jax.random.split(key, 7)
    x = jax.random.normal(ks[0], (B, concept_size), jnp.float32)
    w1 = jax.random.normal(ks[1], (num_classes, 10, concept_size), jnp.float32) * 0.3
    b1 = jax.random.normal(ks[2], (num_classes, 1, 10), jnp.float32) * 0.1
    w2 = jax.random.normal(ks[3], (4, 10), jnp.float32) * 0.3
    b2 = jax.random.normal(ks[4], (1, 4), jnp.float32) * 0.1
    w3 = jax.random.normal(ks[5], (1, 4), jnp.float32) * 0.3
    b3 = jax.random.normal(ks[6], (1, 1), jnp.float32) * 0.1
    params = (w1, b1, w2, b2, w3, b3)

    ref = reference(x, params, tau)

    # Exactness check with the f32 compute path.
    packed_f32 = pack_params(params, tau, compute_dtype=jnp.float32)
    out_f32 = label_predictor_entropy_nn(x, packed_f32, num_classes)
    jax.block_until_ready(out_f32)
    assert out_f32.shape == (B, num_classes), out_f32.shape
    assert jnp.allclose(out_f32, ref, atol=1e-5, rtol=1e-5), \
        float(jnp.max(jnp.abs(out_f32 - ref)))

    # Default bf16 deployment path (f32 accumulation), looser tolerance.
    packed_bf16 = pack_params(params, tau, compute_dtype=jnp.bfloat16)
    out_bf16 = label_predictor_entropy_nn(x, packed_bf16, num_classes)
    jax.block_until_ready(out_bf16)
    assert out_bf16.shape == (B, num_classes), out_bf16.shape
    assert jnp.allclose(out_bf16, ref, atol=5e-2, rtol=5e-2), \
        float(jnp.max(jnp.abs(out_bf16 - ref)))

    print("KERNEL_OK")
</pallas_src>

<mosaic_0001>
module attributes {stable_mosaic.version = 11 : i64} {
  func.func @_mlp_kernel(%arg0: i32, %arg1: memref<8x16xf32, #tpu.memory_space<vmem>>, %arg2: memref<16x128xf32, #tpu.memory_space<vmem>>, %arg3: memref<1x128xf32, #tpu.memory_space<vmem>>, %arg4: memref<128x128xf32, #tpu.memory_space<vmem>>, %arg5: memref<1x128xf32, #tpu.memory_space<vmem>>, %arg6: memref<128x128xf32, #tpu.memory_space<vmem>>, %arg7: memref<1x128xf32, #tpu.memory_space<vmem>>, %arg8: memref<8x128xf32, #tpu.memory_space<vmem>>) attributes {dimension_semantics = [#tpu.dimension_semantics<parallel>], iteration_bounds = array<i64: 1>, scalar_prefetch = 0 : i64, scratch_operands = 0 : i64, tpu.core_type = #tpu.core_type<tc>, window_params = [{transform_indices = @transform_0, window_bounds = array<i64: 8, 16>}, {pipeline_mode = #tpu.pipeline_mode<synchronous>, transform_indices = @transform_1, window_bounds = array<i64: 16, 128>}, {pipeline_mode = #tpu.pipeline_mode<synchronous>, transform_indices = @transform_2, window_bounds = array<i64: 1, 128>}, {pipeline_mode = #tpu.pipeline_mode<synchronous>, transform_indices = @transform_3, window_bounds = array<i64: 128, 128>}, {pipeline_mode = #tpu.pipeline_mode<synchronous>, transform_indices = @transform_4, window_bounds = array<i64: 1, 128>}, {pipeline_mode = #tpu.pipeline_mode<synchronous>, transform_indices = @transform_5, window_bounds = array<i64: 128, 128>}, {pipeline_mode = #tpu.pipeline_mode<synchronous>, transform_indices = @transform_6, window_bounds = array<i64: 1, 128>}, {transform_indices = @transform_7, window_bounds = array<i64: 8, 128>}]} {
    %c0 = arith.constant 0 : index
    %c0_0 = arith.constant 0 : index
    %0 = vector.load %arg1[%c0, %c0_0] : memref<8x16xf32, #tpu.memory_space<vmem>>, vector<8x16xf32>
    %c0_1 = arith.constant 0 : index
    %c0_2 = arith.constant 0 : index
    %1 = vector.load %arg2[%c0_1, %c0_2] : memref<16x128xf32, #tpu.memory_space<vmem>>, vector<16x128xf32>
    %cst = arith.constant dense<0.000000e+00> : vector<8x128xf32>
    %2 = tpu.matmul %0, %1, %cst {dimension_numbers = #tpu.dot_dimension_numbers<[1], [0], [0], [1], [0, 0, 1, 1], [], []>} : vector<8x16xf32>, vector<16x128xf32>, vector<8x128xf32> -> vector<8x128xf32>
    %c0_3 = arith.constant 0 : index
    %c0_4 = arith.constant 0 : index
    %3 = vector.load %arg3[%c0_3, %c0_4] : memref<1x128xf32, #tpu.memory_space<vmem>>, vector<1x128xf32>
    %4 = vector.broadcast %3 : vector<1x128xf32> to vector<8x128xf32>
    %5 = arith.addf %2, %4 : vector<8x128xf32>
    %cst_5 = arith.constant 0.000000e+00 : f32
    %6 = vector.broadcast %cst_5 : f32 to vector<8x128xf32>
    %7 = arith.cmpf oge, %5, %6 : vector<8x128xf32>
    %cst_6 = arith.constant 0.00999999977 : f32
    %8 = vector.broadcast %cst_6 : f32 to vector<8x128xf32>
    %9 = arith.mulf %8, %5 : vector<8x128xf32>
    %10 = arith.select %7, %5, %9 : vector<8x128xi1>, vector<8x128xf32>
    %c0_7 = arith.constant 0 : index
    %c0_8 = arith.constant 0 : index
    %11 = vector.load %arg4[%c0_7, %c0_8] : memref<128x128xf32, #tpu.memory_space<vmem>>, vector<128x128xf32>
    %cst_9 = arith.constant dense<0.000000e+00> : vector<8x128xf32>
    %12 = tpu.matmul %10, %11, %cst_9 {dimension_numbers = #tpu.dot_dimension_numbers<[1], [0], [0], [1], [0, 0, 1, 1], [], []>} : vector<8x128xf32>, vector<128x128xf32>, vector<8x128xf32> -> vector<8x128xf32>
    %c0_10 = arith.constant 0 : index
    %c0_11 = arith.constant 0 : index
    %13 = vector.load %arg5[%c0_10, %c0_11] : memref<1x128xf32, #tpu.memory_space<vmem>>, vector<1x128xf32>
    %14 = vector.broadcast %13 : vector<1x128xf32> to vector<8x128xf32>
    %15 = arith.addf %12, %14 : vector<8x128xf32>
    %cst_12 = arith.constant 0.000000e+00 : f32
    %16 = vector.broadcast %cst_12 : f32 to vector<8x128xf32>
    %17 = arith.cmpf oge, %15, %16 : vector<8x128xf32>
    %cst_13 = arith.constant 0.00999999977 : f32
    %18 = vector.broadcast %cst_13 : f32 to vector<8x128xf32>
    %19 = arith.mulf %18, %15 : vector<8x128xf32>
    %20 = arith.select %17, %15, %19 : vector<8x128xi1>, vector<8x128xf32>
    %c0_14 = arith.constant 0 : index
    %c0_15 = arith.constant 0 : index
    %21 = vector.load %arg6[%c0_14, %c0_15] : memref<128x128xf32, #tpu.memory_space<vmem>>, vector<128x128xf32>
    %cst_16 = arith.constant dense<0.000000e+00> : vector<8x128xf32>
    %22 = tpu.matmul %20, %21, %cst_16 {dimension_numbers = #tpu.dot_dimension_numbers<[1], [0], [0], [1], [0, 0, 1, 1], [], []>} : vector<8x128xf32>, vector<128x128xf32>, vector<8x128xf32> -> vector<8x128xf32>
    %c0_17 = arith.constant 0 : index
    %c0_18 = arith.constant 0 : index
    %23 = vector.load %arg7[%c0_17, %c0_18] : memref<1x128xf32, #tpu.memory_space<vmem>>, vector<1x128xf32>
    %24 = vector.broadcast %23 : vector<1x128xf32> to vector<8x128xf32>
    %25 = arith.addf %22, %24 : vector<8x128xf32>
    %c0_19 = arith.constant 0 : index
    %c0_20 = arith.constant 0 : index
    %26 = vector.load %arg8[%c0_19, %c0_20] : memref<8x128xf32, #tpu.memory_space<vmem>>, vector<8x128xf32>
    tpu.vector_store %arg8[%c0_19, %c0_20], %25 {strides = array<i32>} : memref<8x128xf32, #tpu.memory_space<vmem>>, vector<8x128xf32>,
    return
  }
  func.func @transform_0(%arg0: i32) -> (i32, i32) {
    %c0_i32 = arith.constant 0 : i32
    %c0_i32_0 = arith.constant 0 : i32
    return %arg0, %c0_i32 : i32, i32
  }
  func.func @transform_1(%arg0: i32) -> (i32, i32) {
    %c0_i32 = arith.constant 0 : i32
    %c0_i32_0 = arith.constant 0 : i32
    %c0_i32_1 = arith.constant 0 : i32
    return %c0_i32, %c0_i32_0 : i32, i32
  }
  func.func @transform_2(%arg0: i32) -> (i32, i32) {
    %c0_i32 = arith.constant 0 : i32
    %c0_i32_0 = arith.constant 0 : i32
    %c0_i32_1 = arith.constant 0 : i32
    return %c0_i32, %c0_i32_0 : i32, i32
  }
  func.func @transform_3(%arg0: i32) -> (i32, i32) {
    %c0_i32 = arith.constant 0 : i32
    %c0_i32_0 = arith.constant 0 : i32
    %c0_i32_1 = arith.constant 0 : i32
    return %c0_i32, %c0_i32_0 : i32, i32
  }
  func.func @transform_4(%arg0: i32) -> (i32, i32) {
    %c0_i32 = arith.constant 0 : i32
    %c0_i32_0 = arith.constant 0 : i32
    %c0_i32_1 = arith.constant 0 : i32
    return %c0_i32, %c0_i32_0 : i32, i32
  }
  func.func @transform_5(%arg0: i32) -> (i32, i32) {
    %c0_i32 = arith.constant 0 : i32
    %c0_i32_0 = arith.constant 0 : i32
    %c0_i32_1 = arith.constant 0 : i32
    return %c0_i32, %c0_i32_0 : i32, i32
  }
  func.func @transform_6(%arg0: i32) -> (i32, i32) {
    %c0_i32 = arith.constant 0 : i32
    %c0_i32_0 = arith.constant 0 : i32
    %c0_i32_1 = arith.constant 0 : i32
    return %c0_i32, %c0_i32_0 : i32, i32
  }
  func.func @transform_7(%arg0: i32) -> (i32, i32) {
    %c0_i32 = arith.constant 0 : i32
    %c0_i32_0 = arith.constant 0 : i32
    return %arg0, %c0_i32 : i32, i32
  }
}

module attributes {stable_mosaic.version = 11 : i64} {
  func.func @_mlp_kernel(%arg0: i32, %arg1: memref<8x16xf32, #tpu.memory_space<vmem>>, %arg2: memref<16x128xf32, #tpu.memory_space<vmem>>, %arg3: memref<1x128xf32, #tpu.memory_space<vmem>>, %arg4: memref<128x128xf32, #tpu.memory_space<vmem>>, %arg5: memref<1x128xf32, #tpu.memory_space<vmem>>, %arg6: memref<128x128xf32, #tpu.memory_space<vmem>>, %arg7: memref<1x128xf32, #tpu.memory_space<vmem>>, %arg8: memref<8x128xf32, #tpu.memory_space<vmem>>) attributes {dimension_semantics = [#tpu.dimension_semantics<parallel>], iteration_bounds = array<i64: 1>, scalar_prefetch = 0 : i64, scratch_operands = 0 : i64, tpu.core_type = #tpu.core_type<tc>, window_params = [{transform_indices = @transform_0, window_bounds = array<i64: 8, 16>}, {pipeline_mode = #tpu.pipeline_mode<synchronous>, transform_indices = @transform_1, window_bounds = array<i64: 16, 128>}, {pipeline_mode = #tpu.pipeline_mode<synchronous>, transform_indices = @transform_2, window_bounds = array<i64: 1, 128>}, {pipeline_mode = #tpu.pipeline_mode<synchronous>, transform_indices = @transform_3, window_bounds = array<i64: 128, 128>}, {pipeline_mode = #tpu.pipeline_mode<synchronous>, transform_indices = @transform_4, window_bounds = array<i64: 1, 128>}, {pipeline_mode = #tpu.pipeline_mode<synchronous>, transform_indices = @transform_5, window_bounds = array<i64: 128, 128>}, {pipeline_mode = #tpu.pipeline_mode<synchronous>, transform_indices = @transform_6, window_bounds = array<i64: 1, 128>}, {transform_indices = @transform_7, window_bounds = array<i64: 8, 128>}]} {
    %c0 = arith.constant 0 : index
    %c0_0 = arith.constant 0 : index
    %0 = vector.load %arg1[%c0, %c0_0] : memref<8x16xf32, #tpu.memory_space<vmem>>, vector<8x16xf32>
    %c0_1 = arith.constant 0 : index
    %c0_2 = arith.constant 0 : index
    %1 = vector.load %arg2[%c0_1, %c0_2] : memref<16x128xf32, #tpu.memory_space<vmem>>, vector<16x128xf32>
    %cst = arith.constant dense<0.000000e+00> : vector<8x128xf32>
    %2 = tpu.matmul %0, %1, %cst {dimension_numbers = #tpu.dot_dimension_numbers<[1], [0], [0], [1], [0, 0, 1, 1], [], []>} : vector<8x16xf32>, vector<16x128xf32>, vector<8x128xf32> -> vector<8x128xf32>
    %c0_3 = arith.constant 0 : index
    %c0_4 = arith.constant 0 : index
    %3 = vector.load %arg3[%c0_3, %c0_4] : memref<1x128xf32, #tpu.memory_space<vmem>>, vector<1x128xf32>
    %4 = vector.broadcast %3 : vector<1x128xf32> to vector<8x128xf32>
    %5 = arith.addf %2, %4 : vector<8x128xf32>
    %cst_5 = arith.constant 0.000000e+00 : f32
    %6 = vector.broadcast %cst_5 : f32 to vector<8x128xf32>
    %7 = arith.cmpf oge, %5, %6 : vector<8x128xf32>
    %cst_6 = arith.constant 0.00999999977 : f32
    %8 = vector.broadcast %cst_6 : f32 to vector<8x128xf32>
    %9 = arith.mulf %8, %5 : vector<8x128xf32>
    %10 = arith.select %7, %5, %9 : vector<8x128xi1>, vector<8x128xf32>
    %c0_7 = arith.constant 0 : index
    %c0_8 = arith.constant 0 : index
    %11 = vector.load %arg4[%c0_7, %c0_8] : memref<128x128xf32, #tpu.memory_space<vmem>>, vector<128x128xf32>
    %cst_9 = arith.constant dense<0.000000e+00> : vector<8x128xf32>
    %12 = tpu.matmul %10, %11, %cst_9 {dimension_numbers = #tpu.dot_dimension_numbers<[1], [0], [0], [1], [0, 0, 1, 1], [], []>} : vector<8x128xf32>, vector<128x128xf32>, vector<8x128xf32> -> vector<8x128xf32>
    %c0_10 = arith.constant 0 : index
    %c0_11 = arith.constant 0 : index
    %13 = vector.load %arg5[%c0_10, %c0_11] : memref<1x128xf32, #tpu.memory_space<vmem>>, vector<1x128xf32>
    %14 = vector.broadcast %13 : vector<1x128xf32> to vector<8x128xf32>
    %15 = arith.addf %12, %14 : vector<8x128xf32>
    %cst_12 = arith.constant 0.000000e+00 : f32
    %16 = vector.broadcast %cst_12 : f32 to vector<8x128xf32>
    %17 = arith.cmpf oge, %15, %16 : vector<8x128xf32>
    %cst_13 = arith.constant 0.00999999977 : f32
    %18 = vector.broadcast %cst_13 : f32 to vector<8x128xf32>
    %19 = arith.mulf %18, %15 : vector<8x128xf32>
    %20 = arith.select %17, %15, %19 : vector<8x128xi1>, vector<8x128xf32>
    %c0_14 = arith.constant 0 : index
    %c0_15 = arith.constant 0 : index
    %21 = vector.load %arg6[%c0_14, %c0_15] : memref<128x128xf32, #tpu.memory_space<vmem>>, vector<128x128xf32>
    %cst_16 = arith.constant dense<0.000000e+00> : vector<8x128xf32>
    %22 = tpu.matmul %20, %21, %cst_16 {dimension_numbers = #tpu.dot_dimension_numbers<[1], [0], [0], [1], [0, 0, 1, 1], [], []>} : vector<8x128xf32>, vector<128x128xf32>, vector<8x128xf32> -> vector<8x128xf32>
    %c0_17 = arith.constant 0 : index
    %c0_18 = arith.constant 0 : index
    %23 = vector.load %arg7[%c0_17, %c0_18] : memref<1x128xf32, #tpu.memory_space<vmem>>, vector<1x128xf32>
    %24 = vector.broadcast %23 : vector<1x128xf32> to vector<8x128xf32>
    %25 = arith.addf %22, %24 : vector<8x128xf32>
    %c0_19 = arith.constant 0 : index
    %c0_20 = arith.constant 0 : index
    %26 = vector.load %arg8[%c0_19, %c0_20] : memref<8x128xf32, #tpu.memory_space<vmem>>, vector<8x128xf32>
    tpu.vector_store %arg8[%c0_19, %c0_20], %25 {strides = array<i32>} : memref<8x128xf32, #tpu.memory_space<vmem>>, vector<8x128xf32>,
    return
  }
  func.func @transform_0(%arg0: i32) -> (i32, i32) {
    %c0_i32 = arith.constant 0 : i32
    %c0_i32_0 = arith.constant 0 : i32
    return %arg0, %c0_i32 : i32, i32
  }
  func.func @transform_1(%arg0: i32) -> (i32, i32) {
    %c0_i32 = arith.constant 0 : i32
    %c0_i32_0 = arith.constant 0 : i32
    %c0_i32_1 = arith.constant 0 : i32
    return %c0_i32, %c0_i32_0 : i32, i32
  }
  func.func @transform_2(%arg0: i32) -> (i32, i32) {
    %c0_i32 = arith.constant 0 : i32
    %c0_i32_0 = arith.constant 0 : i32
    %c0_i32_1 = arith.constant 0 : i32
    return %c0_i32, %c0_i32_0 : i32, i32
  }
  func.func @transform_3(%arg0: i32) -> (i32, i32) {
    %c0_i32 = arith.constant 0 : i32
    %c0_i32_0 = arith.constant 0 : i32
    %c0_i32_1 = arith.constant 0 : i32
    return %c0_i32, %c0_i32_0 : i32, i32
  }
  func.func @transform_4(%arg0: i32) -> (i32, i32) {
    %c0_i32 = arith.constant 0 : i32
    %c0_i32_0 = arith.constant 0 : i32
    %c0_i32_1 = arith.constant 0 : i32
    return %c0_i32, %c0_i32_0 : i32, i32
  }
  func.func @transform_5(%arg0: i32) -> (i32, i32) {
    %c0_i32 = arith.constant 0 : i32
    %c0_i32_0 = arith.constant 0 : i32
    %c0_i32_1 = arith.constant 0 : i32
    return %c0_i32, %c0_i32_0 : i32, i32
  }
  func.func @transform_6(%arg0: i32) -> (i32, i32) {
    %c0_i32 = arith.constant 0 : i32
    %c0_i32_0 = arith.constant 0 : i32
    %c0_i32_1 = arith.constant 0 : i32
    return %c0_i32, %c0_i32_0 : i32, i32
  }
  func.func @transform_7(%arg0: i32) -> (i32, i32) {
    %c0_i32 = arith.constant 0 : i32
    %c0_i32_0 = arith.constant 0 : i32
    return %arg0, %c0_i32 : i32, i32
  }
}

</mosaic_0001>

<llo_original>
// kernel: tpu_custom_call.1
$region0: #{tpu_custom_call.1}
  #allocation0 [shape = 'u32[]', space=smem, size = 0x4, offset = 0x4, fixed_abs, tag = 'smem constant byte address 0x4 - core index']
  #allocation1 [shape = 'u32[144,128]{1,0:T(1,128)}', space=vmem, size = 0x12000, scoped, tag = 'internal scratch']
  %s0 = inlined_call_operand.hbm [shape: f32[8,16], index: 0, kind: input, shape index: {}]
  %s1 = inlined_call_operand.hbm [shape: f32[16,128], index: 1, kind: input, shape index: {}]
  %s2 = inlined_call_operand.vmem [shape: f32[1,128], index: 2, kind: input, shape index: {}]
  %s3 = inlined_call_operand.hbm [shape: f32[128,128], index: 3, kind: input, shape index: {}]
  %s4 = inlined_call_operand.vmem [shape: f32[1,128], index: 4, kind: input, shape index: {}]
  %s5 = inlined_call_operand.hbm [shape: f32[128,128], index: 5, kind: input, shape index: {}]
  %s6 = inlined_call_operand.vmem [shape: f32[1,128], index: 6, kind: input, shape index: {}]
  %s7 = inlined_call_operand.hbm [shape: f32[8,128], index: 7, kind: output, shape index: {}]
  %s8 = sld [smem:[#allocation0]]
  $region54: #{tpu_custom_call.1} parent=0
    _
  %s10 = ssub.s32 1, %s8
  %s11 = scalar_select 0, %s10, %s8
  $region1: #{tpu_custom_call.1} parent=0
    #allocation2 [shape = 'u8[4096]{0}', space=vmem, size = 0x1000, scoped, tag = 'input window, operand 0, single buffered']
    #allocation3 [shape = 's32[1]{0}', space=sflag, size = 0x4, scoped, tag = 'scoped memory for tpu_custom_call.1']
    #allocation4 [shape = 's32[1]{0}', space=sflag, size = 0x4, scoped, tag = 'scoped memory for tpu_custom_call.1']
    #allocation5 [shape = 'u8[8192]{0}', space=vmem, size = 0x2000, scoped, tag = 'input window, operand 1, single buffered']
    #allocation6 [shape = 's32[1]{0}', space=sflag, size = 0x4, scoped, tag = 'scoped memory for tpu_custom_call.1']
    #allocation7 [shape = 'u8[65536]{0}', space=vmem, size = 0x10000, scoped, tag = 'input window, operand 3, single buffered']
    #allocation8 [shape = 'u8[65536]{0}', space=vmem, size = 0x10000, scoped, tag = 'input window, operand 5, single buffered']
    #allocation9 [shape = 's32[1]{0}', space=sflag, size = 0x4, scoped, tag = 'scoped memory for tpu_custom_call.1']
    #allocation10 [shape = 'u8[4096]{0}', space=vmem, size = 0x1000, scoped, tag = 'output window, operand 0, single buffered']
    %12 = vsyncpa [#allocation3], 0
    %13 = vsyncpa [#allocation6], 0
    %14 = vsyncpa [#allocation9], 0
    %15 = vsyncpa [#allocation4], 0
    // Predicated region
    $region2: #{tpu_custom_call.1} parent=1 // pred_check
      _
    $region3: #{tpu_custom_call.1} parent=1 // pred_check_branch
      %17 = sbr.rel (0) target = $region5
    $region4: #{tpu_custom_call.1} parent=1 // pred_region
      %s19 = ssub.s32 128, 128
      %20 = vsyncadd [#allocation3], %s19
      %s22 = sshll.u32 [#allocation2], 4
      %s23 = int_to_ptr.vmem [resolvable:$true] %s22
      %25 = dma.hbm_to_vmem [thread:$0]  %s0, 128, %s23, [#allocation3]
    $region5: #{tpu_custom_call.1} parent=1 // pred_fallthru
      _
    // Predicated region
    $region6: #{tpu_custom_call.1} parent=1 // pred_check
      _
    $region7: #{tpu_custom_call.1} parent=1 // pred_check_branch
      %27 = sbr.rel (0) target = $region9
    $region8: #{tpu_custom_call.1} parent=1 // pred_region
      %s29 = ssub.s32 256, 256
      %30 = vsyncadd [#allocation6], %s29
      %s31 = sshll.u32 [#allocation5], 4
      %s32 = int_to_ptr.vmem [resolvable:$true] %s31
      %37 = dma.hbm_to_vmem [thread:$0]  %s1, 256, %s32, [#allocation6], 128, 128, 8
    $region9: #{tpu_custom_call.1} parent=1 // pred_fallthru
      _
    // Predicated region
    $region10: #{tpu_custom_call.1} parent=1 // pred_check
      _
    $region11: #{tpu_custom_call.1} parent=1 // pred_check_branch
      %39 = sbr.rel (0) target = $region13
    $region12: #{tpu_custom_call.1} parent=1 // pred_region
      _
    $region13: #{tpu_custom_call.1} parent=1 // pred_fallthru
      _
    // Predicated region
    $region14: #{tpu_custom_call.1} parent=1 // pred_check
      _
    $region15: #{tpu_custom_call.1} parent=1 // pred_check_branch
      %41 = sbr.rel (0) target = $region17
    $region16: #{tpu_custom_call.1} parent=1 // pred_region
      %s43 = ssub.s32 2048, 2048
      %44 = vsyncadd [#allocation6], %s43
      %s45 = sshll.u32 [#allocation7], 4
      %s46 = int_to_ptr.vmem [resolvable:$true] %s45
      %51 = dma.hbm_to_vmem [thread:$0]  %s3, 2048, %s46, [#allocation6], 128, 128, 8
    $region17: #{tpu_custom_call.1} parent=1 // pred_fallthru
      _
    // Predicated region
    $region18: #{tpu_custom_call.1} parent=1 // pred_check
      _
    $region19: #{tpu_custom_call.1} parent=1 // pred_check_branch
      %53 = sbr.rel (0) target = $region21
    $region20: #{tpu_custom_call.1} parent=1 // pred_region
      _
    $region21: #{tpu_custom_call.1} parent=1 // pred_fallthru
      _
    // Predicated region
    $region22: #{tpu_custom_call.1} parent=1 // pred_check
      _
    $region23: #{tpu_custom_call.1} parent=1 // pred_check_branch
      %55 = sbr.rel (0) target = $region25
    $region24: #{tpu_custom_call.1} parent=1 // pred_region
      %s57 = ssub.s32 2048, 2048
      %58 = vsyncadd [#allocation9], %s57
      %s59 = sshll.u32 [#allocation8], 4
      %s60 = int_to_ptr.vmem [resolvable:$true] %s59
      %65 = dma.hbm_to_vmem [thread:$0]  %s5, 2048, %s60, [#allocation9], 128, 128, 8
    $region25: #{tpu_custom_call.1} parent=1 // pred_fallthru
      _
    // Predicated region
    $region26: #{tpu_custom_call.1} parent=1 // pred_check
      _
    $region27: #{tpu_custom_call.1} parent=1 // pred_check_branch
      %67 = sbr.rel (0) target = $region29
    $region28: #{tpu_custom_call.1} parent=1 // pred_region
      _
    $region29: #{tpu_custom_call.1} parent=1 // pred_fallthru
      _
    // Predicated region
    $region30: #{tpu_custom_call.1} parent=1 // pred_check
      _
    $region31: #{tpu_custom_call.1} parent=1 // pred_check_branch
      %69 = sbr.rel (0) target = $region33
    $region32: #{tpu_custom_call.1} parent=1 // pred_region
      %70 = dma.done [#allocation3], 128
    $region33: #{tpu_custom_call.1} parent=1 // pred_fallthru
      _
    // Predicated region
    $region34: #{tpu_custom_call.1} parent=1 // pred_check
      _
    $region35: #{tpu_custom_call.1} parent=1 // pred_check_branch
      %72 = sbr.rel (0) target = $region37
    $region36: #{tpu_custom_call.1} parent=1 // pred_region
      %73 = dma.done [#allocation6], 256
    $region37: #{tpu_custom_call.1} parent=1 // pred_fallthru
      _
    // Predicated region
    $region38: #{tpu_custom_call.1} parent=1 // pred_check
      _
    $region39: #{tpu_custom_call.1} parent=1 // pred_check_branch
      %75 = sbr.rel (0) target = $region41
    $region40: #{tpu_custom_call.1} parent=1 // pred_region
      %76 = dma.done [#allocation6], 2048
    $region41: #{tpu_custom_call.1} parent=1 // pred_fallthru
      _
    // Predicated region
    $region42: #{tpu_custom_call.1} parent=1 // pred_check
      _
    $region43: #{tpu_custom_call.1} parent=1 // pred_check_branch
      %78 = sbr.rel (0) target = $region45
    $region44: #{tpu_custom_call.1} parent=1 // pred_region
      %79 = dma.done [#allocation9], 2048
    $region45: #{tpu_custom_call.1} parent=1 // pred_fallthru
      _
    %v80 = vld [vmem:[#allocation2] sm:$0xff]
    %v81 = vld [vmem:[#allocation5] sm:$0xff]
    %v82 = vld [vmem:[#allocation5 + $0x8] sm:$0xff]
    %v83 = vld [vmem:[%s2] sm:$0x1]
    %v85 = vlaneseq
    %v86 = vshrl.u32 %v85, 7
    %v87 = vsub.s32 0, %v86
    %v88 = vrot.slane %v83, %v87
    %vm90 = vcmask 130048
    %v92 = vsel %vm90, %v80, 0
    %94 = vmatprep.subr.mxu0 0.0
    %95 = vmatpush1.msra.mxu0 %v81
    %96 = vmatprep.subr.mxu0 0.0
    %97 = vmatpush1.msra.mxu0 %v82
    %98 = vmatprep.subr.mxu0 0.0
    %99 = vmatpush1.msra.mxu0 0.0
    %100 = vmatprep.subr.mxu0 0.0
    %101 = vmatpush1.msra.mxu0 0.0
    %102 = vmatprep.subr.mxu0 0.0
    %103 = vmatpush1.msra.mxu0 0.0
    %104 = vmatprep.subr.mxu0 0.0
    %105 = vmatpush1.msra.mxu0 0.0
    %106 = vmatprep.subr.mxu0 0.0
    %107 = vmatpush1.msra.mxu0 0.0
    %108 = vmatprep.subr.mxu0 0.0
    %109 = vmatpush1.msra.mxu0 0.0
    %110 = vmatprep.subr.mxu0 0.0
    %111 = vmatpush1.msra.mxu0 0.0
    %112 = vmatprep.subr.mxu0 0.0
    %113 = vmatpush1.msra.mxu0 0.0
    %114 = vmatprep.subr.mxu0 0.0
    %115 = vmatpush1.msra.mxu0 0.0
    %116 = vmatprep.subr.mxu0 0.0
    %117 = vmatpush1.msra.mxu0 0.0
    %118 = vmatprep.subr.mxu0 0.0
    %119 = vmatpush1.msra.mxu0 0.0
    %120 = vmatprep.subr.mxu0 0.0
    %121 = vmatpush1.msra.mxu0 0.0
    %122 = vmatprep.subr.mxu0 0.0
    %123 = vmatpush1.msra.mxu0 0.0
    %124 = vmatprep.subr.mxu0 0.0
    %125 = vmatpush1.msra.mxu0 0.0
    %126 = vmatprep.subr.mxu0 0.0
    %127 = vmatpush1.msra.mxu0 0.0
    %128 = vmatprep.subr.mxu0 0.0
    %129 = vmatpush1.msra.mxu0 0.0
    %130 = vmatprep.subr.mxu0 0.0
    %131 = vmatpush1.msra.mxu0 0.0
    %132 = vmatprep.subr.mxu0 0.0
    %133 = vmatpush1.msra.mxu0 0.0
    %134 = vmatprep.subr.mxu0 0.0
    %135 = vmatpush1.msra.mxu0 0.0
    %136 = vmatprep.subr.mxu0 0.0
    %137 = vmatpush1.msra.mxu0 0.0
    %138 = vmatprep.subr.mxu0 0.0
    %139 = vmatpush1.msra.mxu0 0.0
    %140 = vmatprep.subr.mxu0 0.0
    %141 = vmatpush1.msra.mxu0 0.0
    %142 = vmatprep.subr.mxu0 0.0
    %143 = vmatpush1.msra.mxu0 0.0
    %144 = vmatprep.subr.mxu0 0.0
    %145 = vmatpush1.msra.mxu0 0.0
    %146 = vmatprep.subr.mxu0 0.0
    %147 = vmatpush1.msra.mxu0 0.0
    %148 = vmatprep.subr.mxu0 0.0
    %149 = vmatpush1.msra.mxu0 0.0
    %150 = vmatprep.subr.mxu0 0.0
    %151 = vmatpush1.msra.mxu0 0.0
    %152 = vmatprep.subr.mxu0 0.0
    %153 = vmatpush1.msra.mxu0 0.0
    %154 = vmatprep.subr.mxu0 0.0
    %155 = vmatpush1.msra.mxu0 0.0
    %156 = vmatprep.subr.mxu0 0.0
    %157 = vmatpush1.msra.mxu0 0.0
    %158 = vmatprep.mubr.f32.mxu0 0.0
    %159 = vmatmul.mubr.f32.gmra.mrb[0].mxu0 %v92
    %v160 = vpop.f32.mrb[0].mxu0
    %v161 = vadd.f32 %v88, %v160
    %v162 = vpop.f32.mrb[0].mxu0
    %163 = vdwg.mxu0
    %vm164 = vcmp.ge.f32.partialorder %v161, 0.0
    %v165 = vmul.f32 %v161, 0.01
    %v166 = vsel %vm164, %v161, %v165
    %v167 = vld [vmem:[#allocation7] sm:$0xff]
    %v168 = vld [vmem:[#allocation7 + $0x8] sm:$0xff]
    %v169 = vld [vmem:[#allocation7 + $0x10] sm:$0xff]
    %v170 = vld [vmem:[#allocation7 + $0x18] sm:$0xff]
    %v171 = vld [vmem:[#allocation7 + $0x20] sm:$0xff]
    %v172 = vld [vmem:[#allocation7 + $0x28] sm:$0xff]
    %v173 = vld [vmem:[#allocation7 + $0x30] sm:$0xff]
    %v174 = vld [vmem:[#allocation7 + $0x38] sm:$0xff]
    %v175 = vld [vmem:[#allocation7 + $0x40] sm:$0xff]
    %v176 = vld [vmem:[#allocation7 + $0x48] sm:$0xff]
    %v177 = vld [vmem:[#allocation7 + $0x50] sm:$0xff]
    %v178 = vld [vmem:[#allocation7 + $0x58] sm:$0xff]
    %v179 = vld [vmem:[#allocation7 + $0x60] sm:$0xff]
    %v180 = vld [vmem:[#allocation7 + $0x68] sm:$0xff]
    %v181 = vld [vmem:[#allocation7 + $0x70] sm:$0xff]
    %v182 = vld [vmem:[#allocation7 + $0x78] sm:$0xff]
    %v183 = vld [vmem:[%s4] sm:$0x1]
    %v185 = vlaneseq
    %v186 = vshrl.u32 %v185, 7
    %v187 = vsub.s32 0, %v186
    %v188 = vrot.slane %v183, %v187
    %190 = vmatprep.subr.mxu0 0.0
    %191 = vmatpush1.msra.mxu0 %v167
    %192 = vmatprep.subr.mxu0 0.0
    %193 = vmatpush1.msra.mxu0 %v168
    %194 = vmatprep.subr.mxu0 0.0
    %195 = vmatpush1.msra.mxu0 %v169
    %196 = vmatprep.subr.mxu0 0.0
    %197 = vmatpush1.msra.mxu0 %v170
    %198 = vmatprep.subr.mxu0 0.0
    %199 = vmatpush1.msra.mxu0 %v171
    %200 = vmatprep.subr.mxu0 0.0
    %201 = vmatpush1.msra.mxu0 %v172
    %202 = vmatprep.subr.mxu0 0.0
    %203 = vmatpush1.msra.mxu0 %v173
    %204 = vmatprep.subr.mxu0 0.0
    %205 = vmatpush1.msra.mxu0 %v174
    %206 = vmatprep.subr.mxu0 0.0
    %207 = vmatpush1.msra.mxu0 %v175
    %208 = vmatprep.subr.mxu0 0.0
    %209 = vmatpush1.msra.mxu0 %v176
    %210 = vmatprep.subr.mxu0 0.0
    %211 = vmatpush1.msra.mxu0 %v177
    %212 = vmatprep.subr.mxu0 0.0
    %213 = vmatpush1.msra.mxu0 %v178
    %214 = vmatprep.subr.mxu0 0.0
    %215 = vmatpush1.msra.mxu0 %v179
    %216 = vmatprep.subr.mxu0 0.0
    %217 = vmatpush1.msra.mxu0 %v180
    %218 = vmatprep.subr.mxu0 0.0
    %219 = vmatpush1.msra.mxu0 %v181
    %220 = vmatprep.subr.mxu0 0.0
    %221 = vmatpush1.msra.mxu0 %v182
    %222 = vmatprep.subr.mxu0 0.0
    %223 = vmatpush1.msra.mxu0 0.0
    %224 = vmatprep.subr.mxu0 0.0
    %225 = vmatpush1.msra.mxu0 0.0
    %226 = vmatprep.subr.mxu0 0.0
    %227 = vmatpush1.msra.mxu0 0.0
    %228 = vmatprep.subr.mxu0 0.0
    %229 = vmatpush1.msra.mxu0 0.0
    %230 = vmatprep.subr.mxu0 0.0
    %231 = vmatpush1.msra.mxu0 0.0
    %232 = vmatprep.subr.mxu0 0.0
    %233 = vmatpush1.msra.mxu0 0.0
    %234 = vmatprep.subr.mxu0 0.0
    %235 = vmatpush1.msra.mxu0 0.0
    %236 = vmatprep.subr.mxu0 0.0
    %237 = vmatpush1.msra.mxu0 0.0
    %238 = vmatprep.subr.mxu0 0.0
    %239 = vmatpush1.msra.mxu0 0.0
    %240 = vmatprep.subr.mxu0 0.0
    %241 = vmatpush1.msra.mxu0 0.0
    %242 = vmatprep.subr.mxu0 0.0
    %243 = vmatpush1.msra.mxu0 0.0
    %244 = vmatprep.subr.mxu0 0.0
    %245 = vmatpush1.msra.mxu0 0.0
    %246 = vmatprep.subr.mxu0 0.0
    %247 = vmatpush1.msra.mxu0 0.0
    %248 = vmatprep.subr.mxu0 0.0
    %249 = vmatpush1.msra.mxu0 0.0
    %250 = vmatprep.subr.mxu0 0.0
    %251 = vmatpush1.msra.mxu0 0.0
    %252 = vmatprep.subr.mxu0 0.0
    %253 = vmatpush1.msra.mxu0 0.0
    %254 = vmatprep.mubr.f32.mxu0 0.0
    %255 = vmatmul.mubr.f32.gmra.mrb[0].mxu0 %v166
    %v256 = vpop.f32.mrb[0].mxu0
    %v257 = vadd.f32 %v188, %v256
    %v258 = vpop.f32.mrb[0].mxu0
    %259 = vdwg.mxu0
    %vm260 = vcmp.ge.f32.partialorder %v257, 0.0
    %v261 = vmul.f32 %v257, 0.01
    %v262 = vsel %vm260, %v257, %v261
    %v263 = vld [vmem:[#allocation8] sm:$0xff]
    %v264 = vld [vmem:[#allocation8 + $0x8] sm:$0xff]
    %v265 = vld [vmem:[#allocation8 + $0x10] sm:$0xff]
    %v266 = vld [vmem:[#allocation8 + $0x18] sm:$0xff]
    %v267 = vld [vmem:[#allocation8 + $0x20] sm:$0xff]
    %v268 = vld [vmem:[#allocation8 + $0x28] sm:$0xff]
    %v269 = vld [vmem:[#allocation8 + $0x30] sm:$0xff]
    %v270 = vld [vmem:[#allocation8 + $0x38] sm:$0xff]
    %v271 = vld [vmem:[#allocation8 + $0x40] sm:$0xff]
    %v272 = vld [vmem:[#allocation8 + $0x48] sm:$0xff]
    %v273 = vld [vmem:[#allocation8 + $0x50] sm:$0xff]
    %v274 = vld [vmem:[#allocation8 + $0x58] sm:$0xff]
    %v275 = vld [vmem:[#allocation8 + $0x60] sm:$0xff]
    %v276 = vld [vmem:[#allocation8 + $0x68] sm:$0xff]
    %v277 = vld [vmem:[#allocation8 + $0x70] sm:$0xff]
    %v278 = vld [vmem:[#allocation8 + $0x78] sm:$0xff]
    %v279 = vld [vmem:[%s6] sm:$0x1]
    %v281 = vlaneseq
    %v282 = vshrl.u32 %v281, 7
    %v283 = vsub.s32 0, %v282
    %v284 = vrot.slane %v279, %v283
    %286 = vmatprep.subr.mxu0 0.0
    %287 = vmatpush1.msra.mxu0 %v263
    %288 = vmatprep.subr.mxu0 0.0
    %289 = vmatpush1.msra.mxu0 %v264
    %290 = vmatprep.subr.mxu0 0.0
    %291 = vmatpush1.msra.mxu0 %v265
    %292 = vmatprep.subr.mxu0 0.0
    %293 = vmatpush1.msra.mxu0 %v266
    %294 = vmatprep.subr.mxu0 0.0
    %295 = vmatpush1.msra.mxu0 %v267
    %296 = vmatprep.subr.mxu0 0.0
    %297 = vmatpush1.msra.mxu0 %v268
    %298 = vmatprep.subr.mxu0 0.0
    %299 = vmatpush1.msra.mxu0 %v269
    %300 = vmatprep.subr.mxu0 0.0
    %301 = vmatpush1.msra.mxu0 %v270
    %302 = vmatprep.subr.mxu0 0.0
    %303 = vmatpush1.msra.mxu0 %v271
    %304 = vmatprep.subr.mxu0 0.0
    %305 = vmatpush1.msra.mxu0 %v272
    %306 = vmatprep.subr.mxu0 0.0
    %307 = vmatpush1.msra.mxu0 %v273
    %308 = vmatprep.subr.mxu0 0.0
    %309 = vmatpush1.msra.mxu0 %v274
    %310 = vmatprep.subr.mxu0 0.0
    %311 = vmatpush1.msra.mxu0 %v275
    %312 = vmatprep.subr.mxu0 0.0
    %313 = vmatpush1.msra.mxu0 %v276
    %314 = vmatprep.subr.mxu0 0.0
    %315 = vmatpush1.msra.mxu0 %v277
    %316 = vmatprep.subr.mxu0 0.0
    %317 = vmatpush1.msra.mxu0 %v278
    %318 = vmatprep.subr.mxu0 0.0
    %319 = vmatpush1.msra.mxu0 0.0
    %320 = vmatprep.subr.mxu0 0.0
    %321 = vmatpush1.msra.mxu0 0.0
    %322 = vmatprep.subr.mxu0 0.0
    %323 = vmatpush1.msra.mxu0 0.0
    %324 = vmatprep.subr.mxu0 0.0
    %325 = vmatpush1.msra.mxu0 0.0
    %326 = vmatprep.subr.mxu0 0.0
    %327 = vmatpush1.msra.mxu0 0.0
    %328 = vmatprep.subr.mxu0 0.0
    %329 = vmatpush1.msra.mxu0 0.0
    %330 = vmatprep.subr.mxu0 0.0
    %331 = vmatpush1.msra.mxu0 0.0
    %332 = vmatprep.subr.mxu0 0.0
    %333 = vmatpush1.msra.mxu0 0.0
    %334 = vmatprep.subr.mxu0 0.0
    %335 = vmatpush1.msra.mxu0 0.0
    %336 = vmatprep.subr.mxu0 0.0
    %337 = vmatpush1.msra.mxu0 0.0
    %338 = vmatprep.subr.mxu0 0.0
    %339 = vmatpush1.msra.mxu0 0.0
    %340 = vmatprep.subr.mxu0 0.0
    %341 = vmatpush1.msra.mxu0 0.0
    %342 = vmatprep.subr.mxu0 0.0
    %343 = vmatpush1.msra.mxu0 0.0
    %344 = vmatprep.subr.mxu0 0.0
    %345 = vmatpush1.msra.mxu0 0.0
    %346 = vmatprep.subr.mxu0 0.0
    %347 = vmatpush1.msra.mxu0 0.0
    %348 = vmatprep.subr.mxu0 0.0
    %349 = vmatpush1.msra.mxu0 0.0
    %350 = vmatprep.mubr.f32.mxu0 0.0
    %351 = vmatmul.mubr.f32.gmra.mrb[0].mxu0 %v262
    %v352 = vpop.f32.mrb[0].mxu0
    %v353 = vadd.f32 %v284, %v352
    %v354 = vpop.f32.mrb[0].mxu0
    %355 = vdwg.mxu0
    %356 = vst [vmem:[#allocation10] sm:$0xff] %v353
    // Predicated region
    $region46: #{tpu_custom_call.1} parent=1 // pred_check
      _
    $region47: #{tpu_custom_call.1} parent=1 // pred_check_branch
      %358 = sbr.rel (0) target = $region49
    $region48: #{tpu_custom_call.1} parent=1 // pred_region
      %s360 = ssub.s32 128, 128
      %361 = vsyncadd [#allocation4], %s360
      %s363 = sshll.u32 [#allocation10], 4
      %s364 = int_to_ptr.vmem [resolvable:$true] %s363
      %366 = dma.vmem_to_hbm [thread:$0]  %s364, 128, %s7, [#allocation4]
    $region49: #{tpu_custom_call.1} parent=1 // pred_fallthru
      _
    // Predicated region
    $region50: #{tpu_custom_call.1} parent=1 // pred_check
      _
    $region51: #{tpu_custom_call.1} parent=1 // pred_check_branch
      %368 = sbr.rel (0) target = $region53
    $region52: #{tpu_custom_call.1} parent=1 // pred_region
      %369 = dma.done [#allocation4], 128
    $region53: #{tpu_custom_call.1} parent=1 // pred_fallthru
      _
    %370 = vsyncpa [#allocation3], 1
    %371 = vsyncpa [#allocation6], 1
    %372 = vsyncpa [#allocation9], 1
    %373 = vsyncpa [#allocation4], 1

// kernel: tpu_custom_call.1
$region0: #{tpu_custom_call.1}
  #allocation0 [shape = 'u32[]', space=smem, size = 0x4, offset = 0x4, fixed_abs, tag = 'smem constant byte address 0x4 - core index']
  #allocation1 [shape = 'u32[144,128]{1,0:T(1,128)}', space=vmem, size = 0x12000, scoped, tag = 'internal scratch']
  %s0 = inlined_call_operand.hbm [shape: f32[8,16], index: 0, kind: input, shape index: {}]
  %s1 = inlined_call_operand.hbm [shape: f32[16,128], index: 1, kind: input, shape index: {}]
  %s2 = inlined_call_operand.vmem [shape: f32[1,128], index: 2, kind: input, shape index: {}]
  %s3 = inlined_call_operand.hbm [shape: f32[128,128], index: 3, kind: input, shape index: {}]
  %s4 = inlined_call_operand.vmem [shape: f32[1,128], index: 4, kind: input, shape index: {}]
  %s5 = inlined_call_operand.hbm [shape: f32[128,128], index: 5, kind: input, shape index: {}]
  %s6 = inlined_call_operand.vmem [shape: f32[1,128], index: 6, kind: input, shape index: {}]
  %s7 = inlined_call_operand.hbm [shape: f32[8,128], index: 7, kind: output, shape index: {}]
  %s8 = sld [smem:[#allocation0]]
  $region54: #{tpu_custom_call.1} parent=0
    _
  %s10 = ssub.s32 1, %s8
  %s11 = scalar_select 0, %s10, %s8
  $region1: #{tpu_custom_call.1} parent=0
    #allocation2 [shape = 'u8[4096]{0}', space=vmem, size = 0x1000, scoped, tag = 'input window, operand 0, single buffered']
    #allocation3 [shape = 's32[1]{0}', space=sflag, size = 0x4, scoped, tag = 'scoped memory for tpu_custom_call.1']
    #allocation4 [shape = 's32[1]{0}', space=sflag, size = 0x4, scoped, tag = 'scoped memory for tpu_custom_call.1']
    #allocation5 [shape = 'u8[8192]{0}', space=vmem, size = 0x2000, scoped, tag = 'input window, operand 1, single buffered']
    #allocation6 [shape = 's32[1]{0}', space=sflag, size = 0x4, scoped, tag = 'scoped memory for tpu_custom_call.1']
    #allocation7 [shape = 'u8[65536]{0}', space=vmem, size = 0x10000, scoped, tag = 'input window, operand 3, single buffered']
    #allocation8 [shape = 'u8[65536]{0}', space=vmem, size = 0x10000, scoped, tag = 'input window, operand 5, single buffered']
    #allocation9 [shape = 's32[1]{0}', space=sflag, size = 0x4, scoped, tag = 'scoped memory for tpu_custom_call.1']
    #allocation10 [shape = 'u8[4096]{0}', space=vmem, size = 0x1000, scoped, tag = 'output window, operand 0, single buffered']
    %12 = vsyncpa [#allocation3], 0
    %13 = vsyncpa [#allocation6], 0
    %14 = vsyncpa [#allocation9], 0
    %15 = vsyncpa [#allocation4], 0
    // Predicated region
    $region2: #{tpu_custom_call.1} parent=1 // pred_check
      _
    $region3: #{tpu_custom_call.1} parent=1 // pred_check_branch
      %17 = sbr.rel (0) target = $region5
    $region4: #{tpu_custom_call.1} parent=1 // pred_region
      %s19 = ssub.s32 128, 128
      %20 = vsyncadd [#allocation3], %s19
      %s22 = sshll.u32 [#allocation2], 4
      %s23 = int_to_ptr.vmem [resolvable:$true] %s22
      %25 = dma.hbm_to_vmem [thread:$0]  %s0, 128, %s23, [#allocation3]
    $region5: #{tpu_custom_call.1} parent=1 // pred_fallthru
      _
    // Predicated region
    $region6: #{tpu_custom_call.1} parent=1 // pred_check
      _
    $region7: #{tpu_custom_call.1} parent=1 // pred_check_branch
      %27 = sbr.rel (0) target = $region9
    $region8: #{tpu_custom_call.1} parent=1 // pred_region
      %s29 = ssub.s32 256, 256
      %30 = vsyncadd [#allocation6], %s29
      %s31 = sshll.u32 [#allocation5], 4
      %s32 = int_to_ptr.vmem [resolvable:$true] %s31
      %37 = dma.hbm_to_vmem [thread:$0]  %s1, 256, %s32, [#allocation6], 128, 128, 8
    $region9: #{tpu_custom_call.1} parent=1 // pred_fallthru
      _
    // Predicated region
    $region10: #{tpu_custom_call.1} parent=1 // pred_check
      _
    $region11: #{tpu_custom_call.1} parent=1 // pred_check_branch
      %39 = sbr.rel (0) target = $region13
    $region12: #{tpu_custom_call.1} parent=1 // pred_region
      _
    $region13: #{tpu_custom_call.1} parent=1 // pred_fallthru
      _
    // Predicated region
    $region14: #{tpu_custom_call.1} parent=1 // pred_check
      _
    $region15: #{tpu_custom_call.1} parent=1 // pred_check_branch
      %41 = sbr.rel (0) target = $region17
    $region16: #{tpu_custom_call.1} parent=1 // pred_region
      %s43 = ssub.s32 2048, 2048
      %44 = vsyncadd [#allocation6], %s43
      %s45 = sshll.u32 [#allocation7], 4
      %s46 = int_to_ptr.vmem [resolvable:$true] %s45
      %51 = dma.hbm_to_vmem [thread:$0]  %s3, 2048, %s46, [#allocation6], 128, 128, 8
    $region17: #{tpu_custom_call.1} parent=1 // pred_fallthru
      _
    // Predicated region
    $region18: #{tpu_custom_call.1} parent=1 // pred_check
      _
    $region19: #{tpu_custom_call.1} parent=1 // pred_check_branch
      %53 = sbr.rel (0) target = $region21
    $region20: #{tpu_custom_call.1} parent=1 // pred_region
      _
    $region21: #{tpu_custom_call.1} parent=1 // pred_fallthru
      _
    // Predicated region
    $region22: #{tpu_custom_call.1} parent=1 // pred_check
      _
    $region23: #{tpu_custom_call.1} parent=1 // pred_check_branch
      %55 = sbr.rel (0) target = $region25
    $region24: #{tpu_custom_call.1} parent=1 // pred_region
      %s57 = ssub.s32 2048, 2048
      %58 = vsyncadd [#allocation9], %s57
      %s59 = sshll.u32 [#allocation8], 4
      %s60 = int_to_ptr.vmem [resolvable:$true] %s59
      %65 = dma.hbm_to_vmem [thread:$0]  %s5, 2048, %s60, [#allocation9], 128, 128, 8
    $region25: #{tpu_custom_call.1} parent=1 // pred_fallthru
      _
    // Predicated region
    $region26: #{tpu_custom_call.1} parent=1 // pred_check
      _
    $region27: #{tpu_custom_call.1} parent=1 // pred_check_branch
      %67 = sbr.rel (0) target = $region29
    $region28: #{tpu_custom_call.1} parent=1 // pred_region
      _
    $region29: #{tpu_custom_call.1} parent=1 // pred_fallthru
      _
    // Predicated region
    $region30: #{tpu_custom_call.1} parent=1 // pred_check
      _
    $region31: #{tpu_custom_call.1} parent=1 // pred_check_branch
      %69 = sbr.rel (0) target = $region33
    $region32: #{tpu_custom_call.1} parent=1 // pred_region
      %70 = dma.done [#allocation3], 128
    $region33: #{tpu_custom_call.1} parent=1 // pred_fallthru
      _
    // Predicated region
    $region34: #{tpu_custom_call.1} parent=1 // pred_check
      _
    $region35: #{tpu_custom_call.1} parent=1 // pred_check_branch
      %72 = sbr.rel (0) target = $region37
    $region36: #{tpu_custom_call.1} parent=1 // pred_region
      %73 = dma.done [#allocation6], 256
    $region37: #{tpu_custom_call.1} parent=1 // pred_fallthru
      _
    // Predicated region
    $region38: #{tpu_custom_call.1} parent=1 // pred_check
      _
    $region39: #{tpu_custom_call.1} parent=1 // pred_check_branch
      %75 = sbr.rel (0) target = $region41
    $region40: #{tpu_custom_call.1} parent=1 // pred_region
      %76 = dma.done [#allocation6], 2048
    $region41: #{tpu_custom_call.1} parent=1 // pred_fallthru
      _
    // Predicated region
    $region42: #{tpu_custom_call.1} parent=1 // pred_check
      _
    $region43: #{tpu_custom_call.1} parent=1 // pred_check_branch
      %78 = sbr.rel (0) target = $region45
    $region44: #{tpu_custom_call.1} parent=1 // pred_region
      %79 = dma.done [#allocation9], 2048
    $region45: #{tpu_custom_call.1} parent=1 // pred_fallthru
      _
    %v80 = vld [vmem:[#allocation2] sm:$0xff]
    %v81 = vld [vmem:[#allocation5] sm:$0xff]
    %v82 = vld [vmem:[#allocation5 + $0x8] sm:$0xff]
    %v83 = vld [vmem:[%s2] sm:$0x1]
    %v85 = vlaneseq
    %v86 = vshrl.u32 %v85, 7
    %v87 = vsub.s32 0, %v86
    %v88 = vrot.slane %v83, %v87
    %vm90 = vcmask 130048
    %v92 = vsel %vm90, %v80, 0
    %94 = vmatprep.subr.mxu0 0.0
    %95 = vmatpush1.msra.mxu0 %v81
    %96 = vmatprep.subr.mxu0 0.0
    %97 = vmatpush1.msra.mxu0 %v82
    %98 = vmatprep.subr.mxu0 0.0
    %99 = vmatpush1.msra.mxu0 0.0
    %100 = vmatprep.subr.mxu0 0.0
    %101 = vmatpush1.msra.mxu0 0.0
    %102 = vmatprep.subr.mxu0 0.0
    %103 = vmatpush1.msra.mxu0 0.0
    %104 = vmatprep.subr.mxu0 0.0
    %105 = vmatpush1.msra.mxu0 0.0
    %106 = vmatprep.subr.mxu0 0.0
    %107 = vmatpush1.msra.mxu0 0.0
    %108 = vmatprep.subr.mxu0 0.0
    %109 = vmatpush1.msra.mxu0 0.0
    %110 = vmatprep.subr.mxu0 0.0
    %111 = vmatpush1.msra.mxu0 0.0
    %112 = vmatprep.subr.mxu0 0.0
    %113 = vmatpush1.msra.mxu0 0.0
    %114 = vmatprep.subr.mxu0 0.0
    %115 = vmatpush1.msra.mxu0 0.0
    %116 = vmatprep.subr.mxu0 0.0
    %117 = vmatpush1.msra.mxu0 0.0
    %118 = vmatprep.subr.mxu0 0.0
    %119 = vmatpush1.msra.mxu0 0.0
    %120 = vmatprep.subr.mxu0 0.0
    %121 = vmatpush1.msra.mxu0 0.0
    %122 = vmatprep.subr.mxu0 0.0
    %123 = vmatpush1.msra.mxu0 0.0
    %124 = vmatprep.subr.mxu0 0.0
    %125 = vmatpush1.msra.mxu0 0.0
    %126 = vmatprep.subr.mxu0 0.0
    %127 = vmatpush1.msra.mxu0 0.0
    %128 = vmatprep.subr.mxu0 0.0
    %129 = vmatpush1.msra.mxu0 0.0
    %130 = vmatprep.subr.mxu0 0.0
    %131 = vmatpush1.msra.mxu0 0.0
    %132 = vmatprep.subr.mxu0 0.0
    %133 = vmatpush1.msra.mxu0 0.0
    %134 = vmatprep.subr.mxu0 0.0
    %135 = vmatpush1.msra.mxu0 0.0
    %136 = vmatprep.subr.mxu0 0.0
    %137 = vmatpush1.msra.mxu0 0.0
    %138 = vmatprep.subr.mxu0 0.0
    %139 = vmatpush1.msra.mxu0 0.0
    %140 = vmatprep.subr.mxu0 0.0
    %141 = vmatpush1.msra.mxu0 0.0
    %142 = vmatprep.subr.mxu0 0.0
    %143 = vmatpush1.msra.mxu0 0.0
    %144 = vmatprep.subr.mxu0 0.0
    %145 = vmatpush1.msra.mxu0 0.0
    %146 = vmatprep.subr.mxu0 0.0
    %147 = vmatpush1.msra.mxu0 0.0
    %148 = vmatprep.subr.mxu0 0.0
    %149 = vmatpush1.msra.mxu0 0.0
    %150 = vmatprep.subr.mxu0 0.0
    %151 = vmatpush1.msra.mxu0 0.0
    %152 = vmatprep.subr.mxu0 0.0
    %153 = vmatpush1.msra.mxu0 0.0
    %154 = vmatprep.subr.mxu0 0.0
    %155 = vmatpush1.msra.mxu0 0.0
    %156 = vmatprep.subr.mxu0 0.0
    %157 = vmatpush1.msra.mxu0 0.0
    %158 = vmatprep.mubr.f32.mxu0 0.0
    %159 = vmatmul.mubr.f32.gmra.mrb[0].mxu0 %v92
    %v160 = vpop.f32.mrb[0].mxu0
    %v161 = vadd.f32 %v88, %v160
    %v162 = vpop.f32.mrb[0].mxu0
    %163 = vdwg.mxu0
    %vm164 = vcmp.ge.f32.partialorder %v161, 0.0
    %v165 = vmul.f32 %v161, 0.01
    %v166 = vsel %vm164, %v161, %v165
    %v167 = vld [vmem:[#allocation7] sm:$0xff]
    %v168 = vld [vmem:[#allocation7 + $0x8] sm:$0xff]
    %v169 = vld [vmem:[#allocation7 + $0x10] sm:$0xff]
    %v170 = vld [vmem:[#allocation7 + $0x18] sm:$0xff]
    %v171 = vld [vmem:[#allocation7 + $0x20] sm:$0xff]
    %v172 = vld [vmem:[#allocation7 + $0x28] sm:$0xff]
    %v173 = vld [vmem:[#allocation7 + $0x30] sm:$0xff]
    %v174 = vld [vmem:[#allocation7 + $0x38] sm:$0xff]
    %v175 = vld [vmem:[#allocation7 + $0x40] sm:$0xff]
    %v176 = vld [vmem:[#allocation7 + $0x48] sm:$0xff]
    %v177 = vld [vmem:[#allocation7 + $0x50] sm:$0xff]
    %v178 = vld [vmem:[#allocation7 + $0x58] sm:$0xff]
    %v179 = vld [vmem:[#allocation7 + $0x60] sm:$0xff]
    %v180 = vld [vmem:[#allocation7 + $0x68] sm:$0xff]
    %v181 = vld [vmem:[#allocation7 + $0x70] sm:$0xff]
    %v182 = vld [vmem:[#allocation7 + $0x78] sm:$0xff]
    %v183 = vld [vmem:[%s4] sm:$0x1]
    %v185 = vlaneseq
    %v186 = vshrl.u32 %v185, 7
    %v187 = vsub.s32 0, %v186
    %v188 = vrot.slane %v183, %v187
    %190 = vmatprep.subr.mxu0 0.0
    %191 = vmatpush1.msra.mxu0 %v167
    %192 = vmatprep.subr.mxu0 0.0
    %193 = vmatpush1.msra.mxu0 %v168
    %194 = vmatprep.subr.mxu0 0.0
    %195 = vmatpush1.msra.mxu0 %v169
    %196 = vmatprep.subr.mxu0 0.0
    %197 = vmatpush1.msra.mxu0 %v170
    %198 = vmatprep.subr.mxu0 0.0
    %199 = vmatpush1.msra.mxu0 %v171
    %200 = vmatprep.subr.mxu0 0.0
    %201 = vmatpush1.msra.mxu0 %v172
    %202 = vmatprep.subr.mxu0 0.0
    %203 = vmatpush1.msra.mxu0 %v173
    %204 = vmatprep.subr.mxu0 0.0
    %205 = vmatpush1.msra.mxu0 %v174
    %206 = vmatprep.subr.mxu0 0.0
    %207 = vmatpush1.msra.mxu0 %v175
    %208 = vmatprep.subr.mxu0 0.0
    %209 = vmatpush1.msra.mxu0 %v176
    %210 = vmatprep.subr.mxu0 0.0
    %211 = vmatpush1.msra.mxu0 %v177
    %212 = vmatprep.subr.mxu0 0.0
    %213 = vmatpush1.msra.mxu0 %v178
    %214 = vmatprep.subr.mxu0 0.0
    %215 = vmatpush1.msra.mxu0 %v179
    %216 = vmatprep.subr.mxu0 0.0
    %217 = vmatpush1.msra.mxu0 %v180
    %218 = vmatprep.subr.mxu0 0.0
    %219 = vmatpush1.msra.mxu0 %v181
    %220 = vmatprep.subr.mxu0 0.0
    %221 = vmatpush1.msra.mxu0 %v182
    %222 = vmatprep.subr.mxu0 0.0
    %223 = vmatpush1.msra.mxu0 0.0
    %224 = vmatprep.subr.mxu0 0.0
    %225 = vmatpush1.msra.mxu0 0.0
    %226 = vmatprep.subr.mxu0 0.0
    %227 = vmatpush1.msra.mxu0 0.0
    %228 = vmatprep.subr.mxu0 0.0
    %229 = vmatpush1.msra.mxu0 0.0
    %230 = vmatprep.subr.mxu0 0.0
    %231 = vmatpush1.msra.mxu0 0.0
    %232 = vmatprep.subr.mxu0 0.0
    %233 = vmatpush1.msra.mxu0 0.0
    %234 = vmatprep.subr.mxu0 0.0
    %235 = vmatpush1.msra.mxu0 0.0
    %236 = vmatprep.subr.mxu0 0.0
    %237 = vmatpush1.msra.mxu0 0.0
    %238 = vmatprep.subr.mxu0 0.0
    %239 = vmatpush1.msra.mxu0 0.0
    %240 = vmatprep.subr.mxu0 0.0
    %241 = vmatpush1.msra.mxu0 0.0
    %242 = vmatprep.subr.mxu0 0.0
    %243 = vmatpush1.msra.mxu0 0.0
    %244 = vmatprep.subr.mxu0 0.0
    %245 = vmatpush1.msra.mxu0 0.0
    %246 = vmatprep.subr.mxu0 0.0
    %247 = vmatpush1.msra.mxu0 0.0
    %248 = vmatprep.subr.mxu0 0.0
    %249 = vmatpush1.msra.mxu0 0.0
    %250 = vmatprep.subr.mxu0 0.0
    %251 = vmatpush1.msra.mxu0 0.0
    %252 = vmatprep.subr.mxu0 0.0
    %253 = vmatpush1.msra.mxu0 0.0
    %254 = vmatprep.mubr.f32.mxu0 0.0
    %255 = vmatmul.mubr.f32.gmra.mrb[0].mxu0 %v166
    %v256 = vpop.f32.mrb[0].mxu0
    %v257 = vadd.f32 %v188, %v256
    %v258 = vpop.f32.mrb[0].mxu0
    %259 = vdwg.mxu0
    %vm260 = vcmp.ge.f32.partialorder %v257, 0.0
    %v261 = vmul.f32 %v257, 0.01
    %v262 = vsel %vm260, %v257, %v261
    %v263 = vld [vmem:[#allocation8] sm:$0xff]
    %v264 = vld [vmem:[#allocation8 + $0x8] sm:$0xff]
    %v265 = vld [vmem:[#allocation8 + $0x10] sm:$0xff]
    %v266 = vld [vmem:[#allocation8 + $0x18] sm:$0xff]
    %v267 = vld [vmem:[#allocation8 + $0x20] sm:$0xff]
    %v268 = vld [vmem:[#allocation8 + $0x28] sm:$0xff]
    %v269 = vld [vmem:[#allocation8 + $0x30] sm:$0xff]
    %v270 = vld [vmem:[#allocation8 + $0x38] sm:$0xff]
    %v271 = vld [vmem:[#allocation8 + $0x40] sm:$0xff]
    %v272 = vld [vmem:[#allocation8 + $0x48] sm:$0xff]
    %v273 = vld [vmem:[#allocation8 + $0x50] sm:$0xff]
    %v274 = vld [vmem:[#allocation8 + $0x58] sm:$0xff]
    %v275 = vld [vmem:[#allocation8 + $0x60] sm:$0xff]
    %v276 = vld [vmem:[#allocation8 + $0x68] sm:$0xff]
    %v277 = vld [vmem:[#allocation8 + $0x70] sm:$0xff]
    %v278 = vld [vmem:[#allocation8 + $0x78] sm:$0xff]
    %v279 = vld [vmem:[%s6] sm:$0x1]
    %v281 = vlaneseq
    %v282 = vshrl.u32 %v281, 7
    %v283 = vsub.s32 0, %v282
    %v284 = vrot.slane %v279, %v283
    %286 = vmatprep.subr.mxu0 0.0
    %287 = vmatpush1.msra.mxu0 %v263
    %288 = vmatprep.subr.mxu0 0.0
    %289 = vmatpush1.msra.mxu0 %v264
    %290 = vmatprep.subr.mxu0 0.0
    %291 = vmatpush1.msra.mxu0 %v265
    %292 = vmatprep.subr.mxu0 0.0
    %293 = vmatpush1.msra.mxu0 %v266
    %294 = vmatprep.subr.mxu0 0.0
    %295 = vmatpush1.msra.mxu0 %v267
    %296 = vmatprep.subr.mxu0 0.0
    %297 = vmatpush1.msra.mxu0 %v268
    %298 = vmatprep.subr.mxu0 0.0
    %299 = vmatpush1.msra.mxu0 %v269
    %300 = vmatprep.subr.mxu0 0.0
    %301 = vmatpush1.msra.mxu0 %v270
    %302 = vmatprep.subr.mxu0 0.0
    %303 = vmatpush1.msra.mxu0 %v271
    %304 = vmatprep.subr.mxu0 0.0
    %305 = vmatpush1.msra.mxu0 %v272
    %306 = vmatprep.subr.mxu0 0.0
    %307 = vmatpush1.msra.mxu0 %v273
    %308 = vmatprep.subr.mxu0 0.0
    %309 = vmatpush1.msra.mxu0 %v274
    %310 = vmatprep.subr.mxu0 0.0
    %311 = vmatpush1.msra.mxu0 %v275
    %312 = vmatprep.subr.mxu0 0.0
    %313 = vmatpush1.msra.mxu0 %v276
    %314 = vmatprep.subr.mxu0 0.0
    %315 = vmatpush1.msra.mxu0 %v277
    %316 = vmatprep.subr.mxu0 0.0
    %317 = vmatpush1.msra.mxu0 %v278
    %318 = vmatprep.subr.mxu0 0.0
    %319 = vmatpush1.msra.mxu0 0.0
    %320 = vmatprep.subr.mxu0 0.0
    %321 = vmatpush1.msra.mxu0 0.0
    %322 = vmatprep.subr.mxu0 0.0
    %323 = vmatpush1.msra.mxu0 0.0
    %324 = vmatprep.subr.mxu0 0.0
    %325 = vmatpush1.msra.mxu0 0.0
    %326 = vmatprep.subr.mxu0 0.0
    %327 = vmatpush1.msra.mxu0 0.0
    %328 = vmatprep.subr.mxu0 0.0
    %329 = vmatpush1.msra.mxu0 0.0
    %330 = vmatprep.subr.mxu0 0.0
    %331 = vmatpush1.msra.mxu0 0.0
    %332 = vmatprep.subr.mxu0 0.0
    %333 = vmatpush1.msra.mxu0 0.0
    %334 = vmatprep.subr.mxu0 0.0
    %335 = vmatpush1.msra.mxu0 0.0
    %336 = vmatprep.subr.mxu0 0.0
    %337 = vmatpush1.msra.mxu0 0.0
    %338 = vmatprep.subr.mxu0 0.0
    %339 = vmatpush1.msra.mxu0 0.0
    %340 = vmatprep.subr.mxu0 0.0
    %341 = vmatpush1.msra.mxu0 0.0
    %342 = vmatprep.subr.mxu0 0.0
    %343 = vmatpush1.msra.mxu0 0.0
    %344 = vmatprep.subr.mxu0 0.0
    %345 = vmatpush1.msra.mxu0 0.0
    %346 = vmatprep.subr.mxu0 0.0
    %347 = vmatpush1.msra.mxu0 0.0
    %348 = vmatprep.subr.mxu0 0.0
    %349 = vmatpush1.msra.mxu0 0.0
    %350 = vmatprep.mubr.f32.mxu0 0.0
    %351 = vmatmul.mubr.f32.gmra.mrb[0].mxu0 %v262
    %v352 = vpop.f32.mrb[0].mxu0
    %v353 = vadd.f32 %v284, %v352
    %v354 = vpop.f32.mrb[0].mxu0
    %355 = vdwg.mxu0
    %356 = vst [vmem:[#allocation10] sm:$0xff] %v353
    // Predicated region
    $region46: #{tpu_custom_call.1} parent=1 // pred_check
      _
    $region47: #{tpu_custom_call.1} parent=1 // pred_check_branch
      %358 = sbr.rel (0) target = $region49
    $region48: #{tpu_custom_call.1} parent=1 // pred_region
      %s360 = ssub.s32 128, 128
      %361 = vsyncadd [#allocation4], %s360
      %s363 = sshll.u32 [#allocation10], 4
      %s364 = int_to_ptr.vmem [resolvable:$true] %s363
      %366 = dma.vmem_to_hbm [thread:$0]  %s364, 128, %s7, [#allocation4]
    $region49: #{tpu_custom_call.1} parent=1 // pred_fallthru
      _
    // Predicated region
    $region50: #{tpu_custom_call.1} parent=1 // pred_check
      _
    $region51: #{tpu_custom_call.1} parent=1 // pred_check_branch
      %368 = sbr.rel (0) target = $region53
    $region52: #{tpu_custom_call.1} parent=1 // pred_region
      %369 = dma.done [#allocation4], 128
    $region53: #{tpu_custom_call.1} parent=1 // pred_fallthru
      _
    %370 = vsyncpa [#allocation3], 1
    %371 = vsyncpa [#allocation6], 1
    %372 = vsyncpa [#allocation9], 1
    %373 = vsyncpa [#allocation4], 1

</llo_original>
